<compile_context>
chip_gen: v6e
topology: v6e:2x2x1
jax: 0.10.0
libtpu: 0.0.40
codegen_flags: <defaults>
</compile_context>

<pallas_src>
import jax
import jax.numpy as jnp
from jax import lax
from jax.experimental import pallas as pl
from jax.experimental.pallas import tpu as pltpu


def _vector_linear_kernel(v_ref, wt_ref, o_ref):
    # v_ref:  (TB, S*D)  streamed batch tile (lane axis = flattened state*spatial)
    # wt_ref: (D, S*D)   transposed selector, resident across grid steps
    # o_ref:  (D, TB)    lane-dense output tile (lane axis = batch)
    o_ref[...] = lax.dot_general(
        wt_ref[...],
        v_ref[...],
        dimension_numbers=(((1,), (1,)), ((), ())),  # contract S*D <-> S*D
        preferred_element_type=jnp.float32,
        precision=lax.Precision.HIGHEST,
    ).astype(o_ref.dtype)


def _pick_batch_tile(batch, flat_dim, itemsize, target_bytes):
    """Batch tile size.

    Must be either == batch or a multiple of 128 (lane axis of the transposed
    output block).  Targets ~target_bytes of streamed input per block while
    keeping >= 2 grid steps so v7x's two TensorCores both get work.
    """
    if batch <= 128:
        return batch
    tb = target_bytes // max(1, flat_dim * itemsize)
    # Keep at least ~4 grid steps for megacore sharding / pipeline overlap.
    tb = min(tb, pl.cdiv(batch, 4))
    # Round down to a multiple of 128 (also satisfies f32/bf16/int8 packing).
    tb = max(128, (tb // 128) * 128)
    return min(tb, batch)


def vector_linear(v, weights, *, target_block_bytes=16 * 1024 * 1024):
    """v: (B, S, D), weights: (S,)  ->  (B, D) = sum_s v[:, s, :] * weights[s]."""
    B, S, D = v.shape
    SD = S * D
    dtype = v.dtype
    itemsize = jnp.dtype(dtype).itemsize

    # Free (contiguous) reshape: lane axis becomes S*D wide.
    v2 = v.reshape(B, SD)

    # Transposed selector: W_T[d, s*D + d'] = weights[s] * delta(d, d').
    # Tiny (D x S*D), built once in the wrapper, resident in VMEM.
    eye = jnp.eye(D, dtype=dtype)
    w_sel_t = (eye[:, None, :] * weights.astype(dtype)[None, :, None]).reshape(D, SD)
    # TODO(synk): if S*D is small / not 128-aligned, fold a group of batch rows
    # into the lane axis with a block-diagonal selector to avoid lane padding.

    tb = _pick_batch_tile(B, SD, itemsize, target_block_bytes)
    grid = (pl.cdiv(B, tb),)

    cost = pl.CostEstimate(
        flops=2 * B * SD * D,
        transcendentals=0,
        bytes_accessed=(B * SD + D * SD + B * D) * itemsize,
    )

    out_t = pl.pallas_call(
        _vector_linear_kernel,
        out_shape=jax.ShapeDtypeStruct((D, B), dtype),
        grid_spec=pltpu.PrefetchScalarGridSpec(
            num_scalar_prefetch=0,
            grid=grid,
            in_specs=[
                pl.BlockSpec((tb, SD), lambda i: (i, 0)),  # streamed batch tile
                pl.BlockSpec((D, SD), lambda i: (0, 0)),   # resident selector^T
            ],
            out_specs=pl.BlockSpec((D, tb), lambda i: (0, i)),  # lane-dense out
        ),
        compiler_params=pltpu.CompilerParams(
            dimension_semantics=("parallel",),
            vmem_limit_bytes=48 * 1024 * 1024,
        ),
        cost_estimate=cost,
    )(v2, w_sel_t)

    return out_t.T  # (B, D)


def _reference(v, weights):
    return jnp.sum(v * weights[None, :, None], axis=1)


if __name__ == "__main__":
    key = jax.random.PRNGKey(0)

    # Small shapes consistent with the module's forward.
    batch, state_dim, spatial_dim = 2, 4, 16
    kv, kw, kv2 = jax.random.split(key, 3)

    v = jax.random.normal(kv, (batch, state_dim, spatial_dim), dtype=jnp.float32)
    # Module init: nn.Parameter(torch.ones(state_dim))
    weights = jnp.ones((state_dim,), dtype=jnp.float32)

    out = vector_linear(v, weights)
    jax.block_until_ready(out)
    assert out.shape == (batch, spatial_dim)
    assert jnp.allclose(out, _reference(v, weights), atol=1e-5, rtol=1e-5)

    # Non-uniform weights (exercises the selector path).
    w_rand = jax.random.normal(kw, (state_dim,), dtype=jnp.float32)
    out2 = vector_linear(v, w_rand)
    jax.block_until_ready(out2)
    assert jnp.allclose(out2, _reference(v, w_rand), atol=1e-5, rtol=1e-5)

    # Larger batch not divisible by the tile: exercises the multi-step grid,
    # the 128-wide lane-dense output blocks and the padded/masked last block.
    B2 = 260
    v_big = jax.random.normal(kv2, (B2, state_dim, spatial_dim), dtype=jnp.float32)
    out3 = vector_linear(v_big, w_rand)
    jax.block_until_ready(out3)
    assert out3.shape == (B2, spatial_dim)
    assert jnp.allclose(out3, _reference(v_big, w_rand), atol=1e-5, rtol=1e-5)

    print("KERNEL_OK")
</pallas_src>

<mosaic_0001>
module attributes {stable_mosaic.version = 11 : i64} {
  func.func @_vector_linear_kernel(%arg0: i32, %arg1: memref<2x64xf32, #tpu.memory_space<vmem>>, %arg2: memref<16x64xf32, #tpu.memory_space<vmem>>, %arg3: memref<16x2xf32, #tpu.memory_space<vmem>>) attributes {dimension_semantics = [#tpu.dimension_semantics<parallel>], iteration_bounds = array<i64: 1>, scalar_prefetch = 0 : i64, scratch_operands = 0 : i64, tpu.core_type = #tpu.core_type<tc>, window_params = [{transform_indices = @transform_0, window_bounds = array<i64: 2, 64>}, {pipeline_mode = #tpu.pipeline_mode<synchronous>, transform_indices = @transform_1, window_bounds = array<i64: 16, 64>}, {transform_indices = @transform_2, window_bounds = array<i64: 16, 2>}]} {
    %c0 = arith.constant 0 : index
    %c0_0 = arith.constant 0 : index
    %0 = vector.load %arg2[%c0, %c0_0] : memref<16x64xf32, #tpu.memory_space<vmem>>, vector<16x64xf32>
    %c0_1 = arith.constant 0 : index
    %c0_2 = arith.constant 0 : index
    %1 = vector.load %arg1[%c0_1, %c0_2] : memref<2x64xf32, #tpu.memory_space<vmem>>, vector<2x64xf32>
    %cst = arith.constant dense<0.000000e+00> : vector<16x2xf32>
    %2 = tpu.matmul %0, %1, %cst {dimension_numbers = #tpu.dot_dimension_numbers<[1], [1], [0], [0], [0, 0, 1, 0], [], []>, precision = #tpu.contract_precision<fp32>} : vector<16x64xf32>, vector<2x64xf32>, vector<16x2xf32> -> vector<16x2xf32>
    %c0_3 = arith.constant 0 : index
    %c0_4 = arith.constant 0 : index
    %3 = vector.load %arg3[%c0_3, %c0_4] : memref<16x2xf32, #tpu.memory_space<vmem>>, vector<16x2xf32>
    tpu.vector_store %arg3[%c0_3, %c0_4], %2 {strides = array<i32>} : memref<16x2xf32, #tpu.memory_space<vmem>>, vector<16x2xf32>,
    return
  }
  func.func @transform_0(%arg0: i32) -> (i32, i32) {
    %c0_i32 = arith.constant 0 : i32
    %c0_i32_0 = arith.constant 0 : i32
    return %arg0, %c0_i32 : i32, i32
  }
  func.func @transform_1(%arg0: i32) -> (i32, i32) {
    %c0_i32 = arith.constant 0 : i32
    %c0_i32_0 = arith.constant 0 : i32
    %c0_i32_1 = arith.constant 0 : i32
    return %c0_i32, %c0_i32_0 : i32, i32
  }
  func.func @transform_2(%arg0: i32) -> (i32, i32) {
    %c0_i32 = arith.constant 0 : i32
    %c0_i32_0 = arith.constant 0 : i32
    return %c0_i32, %arg0 : i32, i32
  }
}

</mosaic_0001>

<llo_original>
// kernel: tpu_custom_call.1
$region0: #{tpu_custom_call.1}
  #allocation0 [shape = 'u32[]', space=smem, size = 0x4, offset = 0x4, fixed_abs, tag = 'smem constant byte address 0x4 - core index']
  #allocation1 [shape = 'u32[144,128]{1,0:T(1,128)}', space=vmem, size = 0x12000, scoped, tag = 'internal scratch']
  %s0 = inlined_call_operand.hbm [shape: f32[2,64], index: 0, kind: input, shape index: {}]
  %s1 = inlined_call_operand.hbm [shape: f32[16,64], index: 1, kind: input, shape index: {}]
  %s2 = inlined_call_operand.vmem [shape: f32[16,2], index: 2, kind: output, shape index: {}]
  %s3 = sld [smem:[#allocation0]]
  $region26: #{tpu_custom_call.1} parent=0
    _
  %s5 = ssub.s32 1, %s3
  %s6 = scalar_select 0, %s5, %s3
  $region1: #{tpu_custom_call.1} parent=0
    #allocation2 [shape = 'u8[1024]{0}', space=vmem, size = 0x400, scoped, tag = 'input window, operand 0, single buffered']
    #allocation3 [shape = 's32[1]{0}', space=sflag, size = 0x4, scoped, tag = 'scoped memory for tpu_custom_call.1']
    #allocation4 [shape = 'u8[8192]{0}', space=vmem, size = 0x2000, scoped, tag = 'input window, operand 1, single buffered']
    #allocation5 [shape = 's32[1]{0}', space=sflag, size = 0x4, scoped, tag = 'scoped memory for tpu_custom_call.1']
    %7 = vsyncpa [#allocation3], 0
    %8 = vsyncpa [#allocation5], 0
    // Predicated region
    $region2: #{tpu_custom_call.1} parent=1 // pred_check
      _
    $region3: #{tpu_custom_call.1} parent=1 // pred_check_branch
      %10 = sbr.rel (0) target = $region5
    $region4: #{tpu_custom_call.1} parent=1 // pred_region
      %s12 = ssub.s32 32, 32
      %13 = vsyncadd [#allocation3], %s12
      %s15 = sshll.u32 [#allocation2], 4
      %s16 = int_to_ptr.vmem [resolvable:$true] %s15
      %18 = dma.hbm_to_vmem [thread:$0]  %s0, 32, %s16, [#allocation3]
    $region5: #{tpu_custom_call.1} parent=1 // pred_fallthru
      _
    // Predicated region
    $region6: #{tpu_custom_call.1} parent=1 // pred_check
      _
    $region7: #{tpu_custom_call.1} parent=1 // pred_check_branch
      %20 = sbr.rel (0) target = $region9
    $region8: #{tpu_custom_call.1} parent=1 // pred_region
      %s22 = ssub.s32 256, 256
      %23 = vsyncadd [#allocation5], %s22
      %s24 = sshll.u32 [#allocation4], 4
      %s25 = int_to_ptr.vmem [resolvable:$true] %s24
      %30 = dma.hbm_to_vmem [thread:$0]  %s1, 256, %s25, [#allocation5], 128, 128, 8
    $region9: #{tpu_custom_call.1} parent=1 // pred_fallthru
      _
    // Predicated region
    $region10: #{tpu_custom_call.1} parent=1 // pred_check
      _
    $region11: #{tpu_custom_call.1} parent=1 // pred_check_branch
      %32 = sbr.rel (0) target = $region13
    $region12: #{tpu_custom_call.1} parent=1 // pred_region
      %33 = dma.done [#allocation3], 32
    $region13: #{tpu_custom_call.1} parent=1 // pred_fallthru
      _
    // Predicated region
    $region14: #{tpu_custom_call.1} parent=1 // pred_check
      _
    $region15: #{tpu_custom_call.1} parent=1 // pred_check_branch
      %35 = sbr.rel (0) target = $region17
    $region16: #{tpu_custom_call.1} parent=1 // pred_region
      %36 = dma.done [#allocation5], 256
    $region17: #{tpu_custom_call.1} parent=1 // pred_fallthru
      _
    %v37 = vld [vmem:[#allocation4] sm:$0xff]
    %v38 = vld [vmem:[#allocation4 + $0x8] sm:$0xff]
    %v39 = vld [vmem:[#allocation2] sm:$0x3]
    %vm40 = vcmask 523264
    %v42 = vsel %vm40, %v37, 0
    %v45 = vsel %vm40, %v38, 0
    %v48 = vsel %vm40, %v39, 0
    %50 = vmatprep.subr.mxu0 0.0
    %51 = vmatpush1.xpose.msra.mxu0 0.0
    %52 = vmatprep.subr.mxu0 0.0
    %53 = vmatpush1.xpose.msra.mxu0 0.0
    %54 = vmatprep.subr.mxu0 0.0
    %55 = vmatpush1.xpose.msra.mxu0 0.0
    %56 = vmatprep.subr.mxu0 0.0
    %57 = vmatpush1.xpose.msra.mxu0 0.0
    %58 = vmatprep.subr.mxu0 0.0
    %59 = vmatpush1.xpose.msra.mxu0 0.0
    %60 = vmatprep.subr.mxu0 0.0
    %61 = vmatpush1.xpose.msra.mxu0 0.0
    %62 = vmatprep.subr.mxu0 0.0
    %63 = vmatpush1.xpose.msra.mxu0 0.0
    %64 = vmatprep.subr.mxu0 0.0
    %65 = vmatpush1.xpose.msra.mxu0 0.0
    %66 = vmatprep.subr.mxu0 0.0
    %67 = vmatpush1.xpose.msra.mxu0 0.0
    %68 = vmatprep.subr.mxu0 0.0
    %69 = vmatpush1.xpose.msra.mxu0 0.0
    %70 = vmatprep.subr.mxu0 0.0
    %71 = vmatpush1.xpose.msra.mxu0 0.0
    %72 = vmatprep.subr.mxu0 0.0
    %73 = vmatpush1.xpose.msra.mxu0 0.0
    %74 = vmatprep.subr.mxu0 0.0
    %75 = vmatpush1.xpose.msra.mxu0 0.0
    %76 = vmatprep.subr.mxu0 0.0
    %77 = vmatpush1.xpose.msra.mxu0 0.0
    %78 = vmatprep.subr.mxu0 0.0
    %79 = vmatpush1.xpose.msra.mxu0 0.0
    %80 = vmatprep.subr.mxu0 0.0
    %v81 = vand.u32 %v48, 4294901760
    %82 = vmatpush1.xpose.msra.mxu0 %v81
    %83 = vmatprep.subr.mxu0 0.0
    %84 = vmatpush2.xpose.msra.mxu0 0.0
    %85 = vmatprep.subr.mxu0 0.0
    %86 = vmatpush2.xpose.msra.mxu0 0.0
    %87 = vmatprep.subr.mxu0 0.0
    %88 = vmatpush2.xpose.msra.mxu0 0.0
    %89 = vmatprep.subr.mxu0 0.0
    %90 = vmatpush2.xpose.msra.mxu0 0.0
    %91 = vmatprep.subr.mxu0 0.0
    %92 = vmatpush2.xpose.msra.mxu0 0.0
    %93 = vmatprep.subr.mxu0 0.0
    %94 = vmatpush2.xpose.msra.mxu0 0.0
    %95 = vmatprep.subr.mxu0 0.0
    %96 = vmatpush2.xpose.msra.mxu0 0.0
    %97 = vmatprep.subr.mxu0 0.0
    %98 = vmatpush2.xpose.msra.mxu0 0.0
    %99 = vmatprep.subr.mxu0 0.0
    %100 = vmatpush2.xpose.msra.mxu0 0.0
    %101 = vmatprep.subr.mxu0 0.0
    %102 = vmatpush2.xpose.msra.mxu0 0.0
    %103 = vmatprep.subr.mxu0 0.0
    %104 = vmatpush2.xpose.msra.mxu0 0.0
    %105 = vmatprep.subr.mxu0 0.0
    %106 = vmatpush2.xpose.msra.mxu0 0.0
    %107 = vmatprep.subr.mxu0 0.0
    %108 = vmatpush2.xpose.msra.mxu0 0.0
    %109 = vmatprep.subr.mxu0 0.0
    %110 = vmatpush2.xpose.msra.mxu0 0.0
    %111 = vmatprep.subr.mxu0 0.0
    %112 = vmatpush2.xpose.msra.mxu0 0.0
    %113 = vmatprep.subr.mxu0 0.0
    %114 = vmatpush2.xpose.msra.mxu0 0.0
    %115 = vmatprep.mubr.f32.mxu0 0.0
    %v116 = vand.u32 %v42, 4294901760
    %v117 = vsub.f32 %v42, %v116
    %v118 = vand.u32 %v117, 4294901760
    %v119 = vsub.f32 %v117, %v118
    %v120 = vand.u32 %v119, 4294901760
    %121 = vmatmul.mubr.f32.gmra.mxu0 %v120
    %v122 = vpop.f32.mrf.mxu0
    %v123 = vadd.f32 0.0, %v122
    %v124 = vpop.f32.mrf.mxu0
    %125 = vmatprep.mubr.f32.mxu0 0.0
    %v126 = vand.u32 %v45, 4294901760
    %v127 = vsub.f32 %v45, %v126
    %v128 = vand.u32 %v127, 4294901760
    %v129 = vsub.f32 %v127, %v128
    %v130 = vand.u32 %v129, 4294901760
    %131 = vmatmul.mubr.f32.gmra.mxu0 %v130
    %v132 = vpop.f32.mrf.mxu0
    %v133 = vadd.f32 0.0, %v132
    %v134 = vpop.f32.mrf.mxu0
    %135 = vdwg.mxu0
    %136 = vmatprep.subr.mxu0 0.0
    %137 = vmatpush1.xpose.msra.mxu0 0.0
    %138 = vmatprep.subr.mxu0 0.0
    %139 = vmatpush1.xpose.msra.mxu0 0.0
    %140 = vmatprep.subr.mxu0 0.0
    %141 = vmatpush1.xpose.msra.mxu0 0.0
    %142 = vmatprep.subr.mxu0 0.0
    %143 = vmatpush1.xpose.msra.mxu0 0.0
    %144 = vmatprep.subr.mxu0 0.0
    %145 = vmatpush1.xpose.msra.mxu0 0.0
    %146 = vmatprep.subr.mxu0 0.0
    %147 = vmatpush1.xpose.msra.mxu0 0.0
    %148 = vmatprep.subr.mxu0 0.0
    %149 = vmatpush1.xpose.msra.mxu0 0.0
    %150 = vmatprep.subr.mxu0 0.0
    %151 = vmatpush1.xpose.msra.mxu0 0.0
    %152 = vmatprep.subr.mxu0 0.0
    %153 = vmatpush1.xpose.msra.mxu0 0.0
    %154 = vmatprep.subr.mxu0 0.0
    %155 = vmatpush1.xpose.msra.mxu0 0.0
    %156 = vmatprep.subr.mxu0 0.0
    %157 = vmatpush1.xpose.msra.mxu0 0.0
    %158 = vmatprep.subr.mxu0 0.0
    %159 = vmatpush1.xpose.msra.mxu0 0.0
    %160 = vmatprep.subr.mxu0 0.0
    %161 = vmatpush1.xpose.msra.mxu0 0.0
    %162 = vmatprep.subr.mxu0 0.0
    %163 = vmatpush1.xpose.msra.mxu0 0.0
    %164 = vmatprep.subr.mxu0 0.0
    %165 = vmatpush1.xpose.msra.mxu0 0.0
    %166 = vmatprep.subr.mxu0 0.0
    %v167 = vand.u32 %v48, 4294901760
    %v168 = vsub.f32 %v48, %v167
    %v169 = vand.u32 %v168, 4294901760
    %v170 = vsub.f32 %v168, %v169
    %v171 = vand.u32 %v170, 4294901760
    %172 = vmatpush1.xpose.msra.mxu0 %v171
    %173 = vmatprep.subr.mxu0 0.0
    %174 = vmatpush2.xpose.msra.mxu0 0.0
    %175 = vmatprep.subr.mxu0 0.0
    %176 = vmatpush2.xpose.msra.mxu0 0.0
    %177 = vmatprep.subr.mxu0 0.0
    %178 = vmatpush2.xpose.msra.mxu0 0.0
    %179 = vmatprep.subr.mxu0 0.0
    %180 = vmatpush2.xpose.msra.mxu0 0.0
    %181 = vmatprep.subr.mxu0 0.0
    %182 = vmatpush2.xpose.msra.mxu0 0.0
    %183 = vmatprep.subr.mxu0 0.0
    %184 = vmatpush2.xpose.msra.mxu0 0.0
    %185 = vmatprep.subr.mxu0 0.0
    %186 = vmatpush2.xpose.msra.mxu0 0.0
    %187 = vmatprep.subr.mxu0 0.0
    %188 = vmatpush2.xpose.msra.mxu0 0.0
    %189 = vmatprep.subr.mxu0 0.0
    %190 = vmatpush2.xpose.msra.mxu0 0.0
    %191 = vmatprep.subr.mxu0 0.0
    %192 = vmatpush2.xpose.msra.mxu0 0.0
    %193 = vmatprep.subr.mxu0 0.0
    %194 = vmatpush2.xpose.msra.mxu0 0.0
    %195 = vmatprep.subr.mxu0 0.0
    %196 = vmatpush2.xpose.msra.mxu0 0.0
    %197 = vmatprep.subr.mxu0 0.0
    %198 = vmatpush2.xpose.msra.mxu0 0.0
    %199 = vmatprep.subr.mxu0 0.0
    %200 = vmatpush2.xpose.msra.mxu0 0.0
    %201 = vmatprep.subr.mxu0 0.0
    %202 = vmatpush2.xpose.msra.mxu0 0.0
    %203 = vmatprep.subr.mxu0 0.0
    %204 = vmatpush2.xpose.msra.mxu0 0.0
    %205 = vmatprep.mubr.f32.mxu0 0.0
    %v206 = vand.u32 %v42, 4294901760
    %207 = vmatmul.mubr.f32.gmra.mxu0 %v206
    %v208 = vpop.f32.mrf.mxu0
    %v209 = vadd.f32 %v123, %v208
    %v210 = vpop.f32.mrf.mxu0
    %211 = vmatprep.mubr.f32.mxu0 0.0
    %v212 = vand.u32 %v45, 4294901760
    %213 = vmatmul.mubr.f32.gmra.mxu0 %v212
    %v214 = vpop.f32.mrf.mxu0
    %v215 = vadd.f32 %v133, %v214
    %v216 = vpop.f32.mrf.mxu0
    %217 = vdwg.mxu0
    %218 = vmatprep.subr.mxu0 0.0
    %219 = vmatpush1.xpose.msra.mxu0 0.0
    %220 = vmatprep.subr.mxu0 0.0
    %221 = vmatpush1.xpose.msra.mxu0 0.0
    %222 = vmatprep.subr.mxu0 0.0
    %223 = vmatpush1.xpose.msra.mxu0 0.0
    %224 = vmatprep.subr.mxu0 0.0
    %225 = vmatpush1.xpose.msra.mxu0 0.0
    %226 = vmatprep.subr.mxu0 0.0
    %227 = vmatpush1.xpose.msra.mxu0 0.0
    %228 = vmatprep.subr.mxu0 0.0
    %229 = vmatpush1.xpose.msra.mxu0 0.0
    %230 = vmatprep.subr.mxu0 0.0
    %231 = vmatpush1.xpose.msra.mxu0 0.0
    %232 = vmatprep.subr.mxu0 0.0
    %233 = vmatpush1.xpose.msra.mxu0 0.0
    %234 = vmatprep.subr.mxu0 0.0
    %235 = vmatpush1.xpose.msra.mxu0 0.0
    %236 = vmatprep.subr.mxu0 0.0
    %237 = vmatpush1.xpose.msra.mxu0 0.0
    %238 = vmatprep.subr.mxu0 0.0
    %239 = vmatpush1.xpose.msra.mxu0 0.0
    %240 = vmatprep.subr.mxu0 0.0
    %241 = vmatpush1.xpose.msra.mxu0 0.0
    %242 = vmatprep.subr.mxu0 0.0
    %243 = vmatpush1.xpose.msra.mxu0 0.0
    %244 = vmatprep.subr.mxu0 0.0
    %245 = vmatpush1.xpose.msra.mxu0 0.0
    %246 = vmatprep.subr.mxu0 0.0
    %247 = vmatpush1.xpose.msra.mxu0 0.0
    %248 = vmatprep.subr.mxu0 0.0
    %v249 = vand.u32 %v48, 4294901760
    %v250 = vsub.f32 %v48, %v249
    %251 = vmatpush1.xpose.msra.mxu0 %v250
    %252 = vmatprep.subr.mxu0 0.0
    %253 = vmatpush2.xpose.msra.mxu0 0.0
    %254 = vmatprep.subr.mxu0 0.0
    %255 = vmatpush2.xpose.msra.mxu0 0.0
    %256 = vmatprep.subr.mxu0 0.0
    %257 = vmatpush2.xpose.msra.mxu0 0.0
    %258 = vmatprep.subr.mxu0 0.0
    %259 = vmatpush2.xpose.msra.mxu0 0.0
    %260 = vmatprep.subr.mxu0 0.0
    %261 = vmatpush2.xpose.msra.mxu0 0.0
    %262 = vmatprep.subr.mxu0 0.0
    %263 = vmatpush2.xpose.msra.mxu0 0.0
    %264 = vmatprep.subr.mxu0 0.0
    %265 = vmatpush2.xpose.msra.mxu0 0.0
    %266 = vmatprep.subr.mxu0 0.0
    %267 = vmatpush2.xpose.msra.mxu0 0.0
    %268 = vmatprep.subr.mxu0 0.0
    %269 = vmatpush2.xpose.msra.mxu0 0.0
    %270 = vmatprep.subr.mxu0 0.0
    %271 = vmatpush2.xpose.msra.mxu0 0.0
    %272 = vmatprep.subr.mxu0 0.0
    %273 = vmatpush2.xpose.msra.mxu0 0.0
    %274 = vmatprep.subr.mxu0 0.0
    %275 = vmatpush2.xpose.msra.mxu0 0.0
    %276 = vmatprep.subr.mxu0 0.0
    %277 = vmatpush2.xpose.msra.mxu0 0.0
    %278 = vmatprep.subr.mxu0 0.0
    %279 = vmatpush2.xpose.msra.mxu0 0.0
    %280 = vmatprep.subr.mxu0 0.0
    %281 = vmatpush2.xpose.msra.mxu0 0.0
    %282 = vmatprep.subr.mxu0 0.0
    %283 = vmatpush2.xpose.msra.mxu0 0.0
    %284 = vmatprep.mubr.f32.mxu0 0.0
    %v285 = vand.u32 %v42, 4294901760
    %v286 = vsub.f32 %v42, %v285
    %287 = vmatmul.mubr.f32.gmra.mxu0 %v286
    %v288 = vpop.f32.mrf.mxu0
    %v289 = vadd.f32 %v209, %v288
    %v290 = vpop.f32.mrf.mxu0
    %291 = vmatprep.mubr.f32.mxu0 0.0
    %v292 = vand.u32 %v45, 4294901760
    %v293 = vsub.f32 %v45, %v292
    %294 = vmatmul.mubr.f32.gmra.mxu0 %v293
    %v295 = vpop.f32.mrf.mxu0
    %v296 = vadd.f32 %v215, %v295
    %v297 = vpop.f32.mrf.mxu0
    %298 = vdwg.mxu0
    %299 = vmatprep.subr.mxu0 0.0
    %300 = vmatpush1.xpose.msra.mxu0 0.0
    %301 = vmatprep.subr.mxu0 0.0
    %302 = vmatpush1.xpose.msra.mxu0 0.0
    %303 = vmatprep.subr.mxu0 0.0
    %304 = vmatpush1.xpose.msra.mxu0 0.0
    %305 = vmatprep.subr.mxu0 0.0
    %306 = vmatpush1.xpose.msra.mxu0 0.0
    %307 = vmatprep.subr.mxu0 0.0
    %308 = vmatpush1.xpose.msra.mxu0 0.0
    %309 = vmatprep.subr.mxu0 0.0
    %310 = vmatpush1.xpose.msra.mxu0 0.0
    %311 = vmatprep.subr.mxu0 0.0
    %312 = vmatpush1.xpose.msra.mxu0 0.0
    %313 = vmatprep.subr.mxu0 0.0
    %314 = vmatpush1.xpose.msra.mxu0 0.0
    %315 = vmatprep.subr.mxu0 0.0
    %316 = vmatpush1.xpose.msra.mxu0 0.0
    %317 = vmatprep.subr.mxu0 0.0
    %318 = vmatpush1.xpose.msra.mxu0 0.0
    %319 = vmatprep.subr.mxu0 0.0
    %320 = vmatpush1.xpose.msra.mxu0 0.0
    %321 = vmatprep.subr.mxu0 0.0
    %322 = vmatpush1.xpose.msra.mxu0 0.0
    %323 = vmatprep.subr.mxu0 0.0
    %324 = vmatpush1.xpose.msra.mxu0 0.0
    %325 = vmatprep.subr.mxu0 0.0
    %326 = vmatpush1.xpose.msra.mxu0 0.0
    %327 = vmatprep.subr.mxu0 0.0
    %328 = vmatpush1.xpose.msra.mxu0 0.0
    %329 = vmatprep.subr.mxu0 0.0
    %v330 = vand.u32 %v48, 4294901760
    %331 = vmatpush1.xpose.msra.mxu0 %v330
    %332 = vmatprep.subr.mxu0 0.0
    %333 = vmatpush2.xpose.msra.mxu0 0.0
    %334 = vmatprep.subr.mxu0 0.0
    %335 = vmatpush2.xpose.msra.mxu0 0.0
    %336 = vmatprep.subr.mxu0 0.0
    %337 = vmatpush2.xpose.msra.mxu0 0.0
    %338 = vmatprep.subr.mxu0 0.0
    %339 = vmatpush2.xpose.msra.mxu0 0.0
    %340 = vmatprep.subr.mxu0 0.0
    %341 = vmatpush2.xpose.msra.mxu0 0.0
    %342 = vmatprep.subr.mxu0 0.0
    %343 = vmatpush2.xpose.msra.mxu0 0.0
    %344 = vmatprep.subr.mxu0 0.0
    %345 = vmatpush2.xpose.msra.mxu0 0.0
    %346 = vmatprep.subr.mxu0 0.0
    %347 = vmatpush2.xpose.msra.mxu0 0.0
    %348 = vmatprep.subr.mxu0 0.0
    %349 = vmatpush2.xpose.msra.mxu0 0.0
    %350 = vmatprep.subr.mxu0 0.0
    %351 = vmatpush2.xpose.msra.mxu0 0.0
    %352 = vmatprep.subr.mxu0 0.0
    %353 = vmatpush2.xpose.msra.mxu0 0.0
    %354 = vmatprep.subr.mxu0 0.0
    %355 = vmatpush2.xpose.msra.mxu0 0.0
    %356 = vmatprep.subr.mxu0 0.0
    %357 = vmatpush2.xpose.msra.mxu0 0.0
    %358 = vmatprep.subr.mxu0 0.0
    %359 = vmatpush2.xpose.msra.mxu0 0.0
    %360 = vmatprep.subr.mxu0 0.0
    %361 = vmatpush2.xpose.msra.mxu0 0.0
    %362 = vmatprep.subr.mxu0 0.0
    %363 = vmatpush2.xpose.msra.mxu0 0.0
    %364 = vmatprep.mubr.f32.mxu0 0.0
    %v365 = vand.u32 %v42, 4294901760
    %v366 = vsub.f32 %v42, %v365
    %v367 = vand.u32 %v366, 4294901760
    %368 = vmatmul.mubr.f32.gmra.mxu0 %v367
    %v369 = vpop.f32.mrf.mxu0
    %v370 = vadd.f32 %v289, %v369
    %v371 = vpop.f32.mrf.mxu0
    %372 = vmatprep.mubr.f32.mxu0 0.0
    %v373 = vand.u32 %v45, 4294901760
    %v374 = vsub.f32 %v45, %v373
    %v375 = vand.u32 %v374, 4294901760
    %376 = vmatmul.mubr.f32.gmra.mxu0 %v375
    %v377 = vpop.f32.mrf.mxu0
    %v378 = vadd.f32 %v296, %v377
    %v379 = vpop.f32.mrf.mxu0
    %380 = vdwg.mxu0
    %381 = vmatprep.subr.mxu0 0.0
    %382 = vmatpush1.xpose.msra.mxu0 0.0
    %383 = vmatprep.subr.mxu0 0.0
    %384 = vmatpush1.xpose.msra.mxu0 0.0
    %385 = vmatprep.subr.mxu0 0.0
    %386 = vmatpush1.xpose.msra.mxu0 0.0
    %387 = vmatprep.subr.mxu0 0.0
    %388 = vmatpush1.xpose.msra.mxu0 0.0
    %389 = vmatprep.subr.mxu0 0.0
    %390 = vmatpush1.xpose.msra.mxu0 0.0
    %391 = vmatprep.subr.mxu0 0.0
    %392 = vmatpush1.xpose.msra.mxu0 0.0
    %393 = vmatprep.subr.mxu0 0.0
    %394 = vmatpush1.xpose.msra.mxu0 0.0
    %395 = vmatprep.subr.mxu0 0.0
    %396 = vmatpush1.xpose.msra.mxu0 0.0
    %397 = vmatprep.subr.mxu0 0.0
    %398 = vmatpush1.xpose.msra.mxu0 0.0
    %399 = vmatprep.subr.mxu0 0.0
    %400 = vmatpush1.xpose.msra.mxu0 0.0
    %401 = vmatprep.subr.mxu0 0.0
    %402 = vmatpush1.xpose.msra.mxu0 0.0
    %403 = vmatprep.subr.mxu0 0.0
    %404 = vmatpush1.xpose.msra.mxu0 0.0
    %405 = vmatprep.subr.mxu0 0.0
    %406 = vmatpush1.xpose.msra.mxu0 0.0
    %407 = vmatprep.subr.mxu0 0.0
    %408 = vmatpush1.xpose.msra.mxu0 0.0
    %409 = vmatprep.subr.mxu0 0.0
    %410 = vmatpush1.xpose.msra.mxu0 0.0
    %411 = vmatprep.subr.mxu0 0.0
    %v412 = vand.u32 %v48, 4294901760
    %v413 = vsub.f32 %v48, %v412
    %v414 = vand.u32 %v413, 4294901760
    %415 = vmatpush1.xpose.msra.mxu0 %v414
    %416 = vmatprep.subr.mxu0 0.0
    %417 = vmatpush2.xpose.msra.mxu0 0.0
    %418 = vmatprep.subr.mxu0 0.0
    %419 = vmatpush2.xpose.msra.mxu0 0.0
    %420 = vmatprep.subr.mxu0 0.0
    %421 = vmatpush2.xpose.msra.mxu0 0.0
    %422 = vmatprep.subr.mxu0 0.0
    %423 = vmatpush2.xpose.msra.mxu0 0.0
    %424 = vmatprep.subr.mxu0 0.0
    %425 = vmatpush2.xpose.msra.mxu0 0.0
    %426 = vmatprep.subr.mxu0 0.0
    %427 = vmatpush2.xpose.msra.mxu0 0.0
    %428 = vmatprep.subr.mxu0 0.0
    %429 = vmatpush2.xpose.msra.mxu0 0.0
    %430 = vmatprep.subr.mxu0 0.0
    %431 = vmatpush2.xpose.msra.mxu0 0.0
    %432 = vmatprep.subr.mxu0 0.0
    %433 = vmatpush2.xpose.msra.mxu0 0.0
    %434 = vmatprep.subr.mxu0 0.0
    %435 = vmatpush2.xpose.msra.mxu0 0.0
    %436 = vmatprep.subr.mxu0 0.0
    %437 = vmatpush2.xpose.msra.mxu0 0.0
    %438 = vmatprep.subr.mxu0 0.0
    %439 = vmatpush2.xpose.msra.mxu0 0.0
    %440 = vmatprep.subr.mxu0 0.0
    %441 = vmatpush2.xpose.msra.mxu0 0.0
    %442 = vmatprep.subr.mxu0 0.0
    %443 = vmatpush2.xpose.msra.mxu0 0.0
    %444 = vmatprep.subr.mxu0 0.0
    %445 = vmatpush2.xpose.msra.mxu0 0.0
    %446 = vmatprep.subr.mxu0 0.0
    %447 = vmatpush2.xpose.msra.mxu0 0.0
    %448 = vmatprep.mubr.f32.mxu0 0.0
    %v449 = vand.u32 %v42, 4294901760
    %450 = vmatmul.mubr.f32.gmra.mxu0 %v449
    %v451 = vpop.f32.mrf.mxu0
    %v452 = vadd.f32 %v370, %v451
    %v453 = vpop.f32.mrf.mxu0
    %454 = vmatprep.mubr.f32.mxu0 0.0
    %v455 = vand.u32 %v45, 4294901760
    %456 = vmatmul.mubr.f32.gmra.mxu0 %v455
    %v457 = vpop.f32.mrf.mxu0
    %v458 = vadd.f32 %v378, %v457
    %v459 = vpop.f32.mrf.mxu0
    %460 = vdwg.mxu0
    %461 = vmatprep.subr.mxu0 0.0
    %462 = vmatpush1.xpose.msra.mxu0 0.0
    %463 = vmatprep.subr.mxu0 0.0
    %464 = vmatpush1.xpose.msra.mxu0 0.0
    %465 = vmatprep.subr.mxu0 0.0
    %466 = vmatpush1.xpose.msra.mxu0 0.0
    %467 = vmatprep.subr.mxu0 0.0
    %468 = vmatpush1.xpose.msra.mxu0 0.0
    %469 = vmatprep.subr.mxu0 0.0
    %470 = vmatpush1.xpose.msra.mxu0 0.0
    %471 = vmatprep.subr.mxu0 0.0
    %472 = vmatpush1.xpose.msra.mxu0 0.0
    %473 = vmatprep.subr.mxu0 0.0
    %474 = vmatpush1.xpose.msra.mxu0 0.0
    %475 = vmatprep.subr.mxu0 0.0
    %476 = vmatpush1.xpose.msra.mxu0 0.0
    %477 = vmatprep.subr.mxu0 0.0
    %478 = vmatpush1.xpose.msra.mxu0 0.0
    %479 = vmatprep.subr.mxu0 0.0
    %480 = vmatpush1.xpose.msra.mxu0 0.0
    %481 = vmatprep.subr.mxu0 0.0
    %482 = vmatpush1.xpose.msra.mxu0 0.0
    %483 = vmatprep.subr.mxu0 0.0
    %484 = vmatpush1.xpose.msra.mxu0 0.0
    %485 = vmatprep.subr.mxu0 0.0
    %486 = vmatpush1.xpose.msra.mxu0 0.0
    %487 = vmatprep.subr.mxu0 0.0
    %488 = vmatpush1.xpose.msra.mxu0 0.0
    %489 = vmatprep.subr.mxu0 0.0
    %490 = vmatpush1.xpose.msra.mxu0 0.0
    %491 = vmatprep.subr.mxu0 0.0
    %v492 = vand.u32 %v48, 4294901760
    %493 = vmatpush1.xpose.msra.mxu0 %v492
    %494 = vmatprep.subr.mxu0 0.0
    %495 = vmatpush2.xpose.msra.mxu0 0.0
    %496 = vmatprep.subr.mxu0 0.0
    %497 = vmatpush2.xpose.msra.mxu0 0.0
    %498 = vmatprep.subr.mxu0 0.0
    %499 = vmatpush2.xpose.msra.mxu0 0.0
    %500 = vmatprep.subr.mxu0 0.0
    %501 = vmatpush2.xpose.msra.mxu0 0.0
    %502 = vmatprep.subr.mxu0 0.0
    %503 = vmatpush2.xpose.msra.mxu0 0.0
    %504 = vmatprep.subr.mxu0 0.0
    %505 = vmatpush2.xpose.msra.mxu0 0.0
    %506 = vmatprep.subr.mxu0 0.0
    %507 = vmatpush2.xpose.msra.mxu0 0.0
    %508 = vmatprep.subr.mxu0 0.0
    %509 = vmatpush2.xpose.msra.mxu0 0.0
    %510 = vmatprep.subr.mxu0 0.0
    %511 = vmatpush2.xpose.msra.mxu0 0.0
    %512 = vmatprep.subr.mxu0 0.0
    %513 = vmatpush2.xpose.msra.mxu0 0.0
    %514 = vmatprep.subr.mxu0 0.0
    %515 = vmatpush2.xpose.msra.mxu0 0.0
    %516 = vmatprep.subr.mxu0 0.0
    %517 = vmatpush2.xpose.msra.mxu0 0.0
    %518 = vmatprep.subr.mxu0 0.0
    %519 = vmatpush2.xpose.msra.mxu0 0.0
    %520 = vmatprep.subr.mxu0 0.0
    %521 = vmatpush2.xpose.msra.mxu0 0.0
    %522 = vmatprep.subr.mxu0 0.0
    %523 = vmatpush2.xpose.msra.mxu0 0.0
    %524 = vmatprep.subr.mxu0 0.0
    %525 = vmatpush2.xpose.msra.mxu0 0.0
    %526 = vmatprep.mubr.f32.mxu0 0.0
    %v527 = vand.u32 %v42, 4294901760
    %528 = vmatmul.mubr.f32.gmra.mxu0 %v527
    %v529 = vpop.f32.mrf.mxu0
    %v530 = vadd.f32 %v452, %v529
    %v531 = vpop.f32.mrf.mxu0
    %532 = vmatprep.mubr.f32.mxu0 0.0
    %v533 = vand.u32 %v45, 4294901760
    %534 = vmatmul.mubr.f32.gmra.mxu0 %v533
    %v535 = vpop.f32.mrf.mxu0
    %v536 = vadd.f32 %v458, %v535
    %v537 = vpop.f32.mrf.mxu0
    %538 = vdwg.mxu0
    %vm539 = vcmask 15360
    %540 = vst.msk [vmem:[%s2] sm:$0xff] %vm539, %v530
    %541 = vst.msk [vmem:[%s2 + $0x8] sm:$0xff] %vm539, %v536
    // Predicated region
    $region18: #{tpu_custom_call.1} parent=1 // pred_check
      _
    $region19: #{tpu_custom_call.1} parent=1 // pred_check_branch
      %543 = sbr.rel (0) target = $region21
    $region20: #{tpu_custom_call.1} parent=1 // pred_region
      _
    $region21: #{tpu_custom_call.1} parent=1 // pred_fallthru
      _
    // Predicated region
    $region22: #{tpu_custom_call.1} parent=1 // pred_check
      _
    $region23: #{tpu_custom_call.1} parent=1 // pred_check_branch
      %545 = sbr.rel (0) target = $region25
    $region24: #{tpu_custom_call.1} parent=1 // pred_region
      _
    $region25: #{tpu_custom_call.1} parent=1 // pred_fallthru
      _
    %546 = vsyncpa [#allocation3], 1
    %547 = vsyncpa [#allocation5], 1

</llo_original>
